<compile_context>
chip_gen: v7x
topology: tpu7x:2x2x1
jax: 0.10.0
libtpu: 0.0.40
codegen_flags: <defaults>
</compile_context>

<pallas_src>
import functools

import jax
import jax.numpy as jnp
from jax.experimental import pallas as pl
from jax.experimental.pallas import tpu as pltpu

_BN_EPS = 1e-5


def dam_kernel(ab_ref, bn_ref, x_ref, out_ref, cbf_ref, *, tj):
    """One (batch b, PAM score-row tile j) grid step.

    ab_ref : SMEM (2,)   f32  [alpha, beta]
    bn_ref : VMEM (C, 2) f32  column 0 = BN scale, column 1 = BN shift
    x_ref  : VMEM (C, L) f32  full batch-b block (constant along j)
    out_ref: VMEM (C, L) f32  output / accumulator block for batch b
    cbf_ref: VMEM (C, L) bf16 scratch: BN+ReLU'd block, cast once per batch
    """
    j = pl.program_id(1)
    n_j = pl.num_programs(1)
    alpha = ab_ref[0]
    beta = ab_ref[1]
    L = cbf_ref.shape[-1]

    # --- once per batch: BN (hoisted batch stats) + ReLU + bf16 cast --------
    @pl.when(j == 0)
    def _():
        x = x_ref[...]                                  # (C, L) f32
        scale = bn_ref[:, 0:1]                          # (C, 1)
        shift = bn_ref[:, 1:2]                          # (C, 1)
        cbf_ref[...] = jnp.maximum(x * scale + shift, 0.0).astype(jnp.bfloat16)

    c_bf = cbf_ref[...]                                 # (C, L) bf16 ("keys")
    if tj == L:
        c_j_bf = c_bf                                   # single row tile
    else:
        start = pl.multiple_of(j * tj, 128)
        c_j_bf = cbf_ref[:, pl.ds(start, tj)]           # (C, TJ) bf16

    # ------------- PAM: rows [j*tj, (j+1)*tj) of the L x L score matrix -----
    # cb[jj, k] = sum_ch c[ch, j*tj+jj] * c[ch, k]   (bf16 MXU, f32 accumulate)
    cb = jnp.einsum('cj,ck->jk', c_j_bf, c_bf,
                    preferred_element_type=jnp.float32)      # (TJ, L)

    # Row softmax over the last (lane) axis.  Valid because cb is symmetric
    # (both operands are the identical bf16 buffer), so softmax(dim=1) of the
    # full matrix equals row-softmax of these rows.
    m = jnp.max(cb, axis=-1, keepdims=True)                  # (TJ, 1)
    p = jnp.exp(cb - m)                                      # (TJ, L)
    inv = pl.reciprocal(jnp.sum(p, axis=-1, keepdims=True), approx=True)
    # alpha and the softmax denominator are both indexed by the contraction
    # axis -> fold them into the bf16 cast (no O(C*L) scale on the output).
    p_bf = (p * (inv * alpha)).astype(jnp.bfloat16)          # (TJ, L)

    # Partial alpha*e_pam contribution of this row tile: (C, TJ) @ (TJ, L).
    pam_part = jnp.einsum('cj,jk->ck', c_j_bf, p_bf,
                          preferred_element_type=jnp.float32)     # (C, L)

    @pl.when(j == 0)
    def _():
        # Fused epilogue init: PAM + CAM residuals = 2*x.
        out_ref[...] = pam_part + 2.0 * x_ref[...]

    @pl.when(j > 0)
    def _():
        out_ref[...] = out_ref[...] + pam_part

    # ------------- CAM on the last row tile (balances the pipeline) ---------
    @pl.when(j == n_j - 1)
    def _():
        # TODO(synk): original CAM reshapes to (B, C-1) and softmaxes over the
        # batch dim -- not runnable PyTorch; canonical channel attention used.
        x_bf = x_ref[...].astype(jnp.bfloat16)
        aa = jnp.einsum('cl,dl->cd', x_bf, x_bf,
                        preferred_element_type=jnp.float32)       # (C, C)
        m2 = jnp.max(aa, axis=-1, keepdims=True)
        p2 = jnp.exp(aa - m2)
        inv2 = pl.reciprocal(jnp.sum(p2, axis=-1, keepdims=True), approx=True)
        # beta and the CAM denominator are indexed by the output row -> fold
        # them into one (C, 1) scale applied after the value matmul.
        e_cam = jnp.einsum('cd,dl->cl', p2.astype(jnp.bfloat16), x_bf,
                           preferred_element_type=jnp.float32) * (inv2 * beta)
        out_ref[...] = out_ref[...] + e_cam


def _working_set_bytes(C, L, tj):
    """Per-step VMEM residency estimate for the pipelined kernel."""
    return (
        2 * 2 * C * L * 4      # x and out (C, L) blocks, double-buffered
        + C * L * 2            # c_bf bf16 scratch
        + C * L * 4            # pam_part f32 temp
        + 3 * tj * L * 4       # cb / p f32 slabs + p_bf
        + (2 << 20)            # small temps + headroom
    )


def _vmem_budget_bytes():
    phys = 64 * 1024 * 1024                      # conservative default: v7x
    try:
        info = pltpu.get_tpu_info()
        phys = int(getattr(info, "vmem_capacity_bytes", phys))
    except Exception:
        pass
    # Never request the full physical VMEM: leave room for compiler-internal
    # scratch.  v7x -> ~52 MiB, v6e/v5e -> ~116 MiB.
    return max(24 * 1024 * 1024, phys - 12 * 1024 * 1024)


def dam_forward(x, gamma, bn_beta, alpha, beta, *, tj=None):
    """x: (B, C, L) float32.  Returns PAM(x, alpha) + CAM(x, beta), (B, C, L)."""
    B, C, L = x.shape
    x = x.astype(jnp.float32)

    # BatchNorm1d batch statistics hoisted out of the kernel (global over
    # (B, L) per channel; training mode, biased variance, eps=1e-5).
    mean = jnp.mean(x, axis=(0, 2))                                     # (C,)
    var = jnp.mean(jnp.square(x - mean[None, :, None]), axis=(0, 2))    # biased
    scale = gamma.astype(jnp.float32) * jax.lax.rsqrt(var + _BN_EPS)
    shift = bn_beta.astype(jnp.float32) - mean * scale
    bn_params = jnp.stack([scale, shift], axis=-1)                      # (C, 2)

    ab = jnp.stack([jnp.asarray(alpha, jnp.float32),
                    jnp.asarray(beta, jnp.float32)])                    # (2,)

    budget = _vmem_budget_bytes()

    # Tile size for the PAM score-row / contraction axis: largest lane-aligned
    # divisor of L whose working set fits the VMEM budget.
    if tj is None:
        tj = None
        for cand in (1024, 512, 256, 128):
            if cand <= L and L % cand == 0 and _working_set_bytes(C, L, cand) <= budget:
                tj = cand
                break
        if tj is None:
            tj = 128 if (L >= 128 and L % 128 == 0) else L
    tj = min(tj, L)
    assert L % tj == 0, "tj must divide L"
    assert tj == L or tj % 128 == 0, "tj must be lane-aligned (x128) or == L"
    n_j = L // tj

    kernel = functools.partial(dam_kernel, tj=tj)

    flops = int(B * (4 * C * L * L + 4 * C * C * L))
    transcendentals = int(B * (L * L + C * C))
    # x read once per batch + out written once per batch (accumulator is VMEM
    # resident across the j axis) + tiny BN / alpha-beta scalars.
    bytes_accessed = int(2 * B * C * L * 4 + C * 2 * 4 + 2 * 4)

    working = _working_set_bytes(C, L, tj)
    vmem_limit = int(min(budget, max(24 * 1024 * 1024, working)))

    return pl.pallas_call(
        kernel,
        out_shape=jax.ShapeDtypeStruct((B, C, L), jnp.float32),
        grid=(B, n_j),
        in_specs=[
            pl.BlockSpec(memory_space=pltpu.MemorySpace.SMEM),     # [alpha, beta]
            pl.BlockSpec((C, 2), lambda b, j: (0, 0)),             # BN scale/shift
            pl.BlockSpec((None, C, L), lambda b, j: (b, 0, 0)),    # x (per batch)
        ],
        out_specs=pl.BlockSpec((None, C, L), lambda b, j: (b, 0, 0)),
        scratch_shapes=[pltpu.VMEM((C, L), jnp.bfloat16)],         # cached BN+ReLU
        compiler_params=pltpu.CompilerParams(
            dimension_semantics=("parallel", "arbitrary"),
            vmem_limit_bytes=vmem_limit,
        ),
        cost_estimate=pl.CostEstimate(
            flops=flops,
            transcendentals=transcendentals,
            bytes_accessed=bytes_accessed,
        ),
    )(ab, bn_params, x)


def dam_reference(x, gamma, bn_beta, alpha, beta):
    """Pure-JAX f32 reference (kernel uses bf16 MXU feeds + approx reciprocal)."""
    x = x.astype(jnp.float32)
    C = x.shape[1]
    g = gamma.reshape(1, C, 1).astype(jnp.float32)
    b = bn_beta.reshape(1, C, 1).astype(jnp.float32)

    mean = jnp.mean(x, axis=(0, 2), keepdims=True)
    var = jnp.mean((x - mean) ** 2, axis=(0, 2), keepdims=True)
    c = jnp.maximum((x - mean) * jax.lax.rsqrt(var + _BN_EPS) * g + b, 0.0)

    cb = jnp.einsum('bcl,bcm->blm', c, c)
    s = jax.nn.softmax(cb, axis=1)
    pam = alpha * jnp.einsum('bcj,bij->bci', c, s) + x

    aa = jnp.einsum('bcl,bdl->bcd', x, x)
    xs = jax.nn.softmax(aa, axis=-1)
    cam = beta * jnp.einsum('bcd,bdl->bcl', xs, x) + x
    return pam + cam


if __name__ == "__main__":
    key = jax.random.PRNGKey(0)
    B, C, H, W = 2, 8, 16, 16                  # small NCHW input
    x_nchw = jax.random.normal(key, (B, C, H, W), dtype=jnp.float32)
    x = x_nchw.reshape(B, C, H * W)            # (B, C, L) layout for the kernel

    # Deterministic BatchNorm1d params (PyTorch default init: weight=1, bias=0).
    gamma = jnp.ones((C,), dtype=jnp.float32)
    bn_beta = jnp.zeros((C,), dtype=jnp.float32)
    alpha, beta = 0.5, 0.5

    # tj=128 -> two score-row tiles per batch, exercising the accumulator path
    # and the last-step CAM branch on a step other than j == 0.
    out = dam_forward(x, gamma, bn_beta, alpha, beta, tj=128)
    out = jax.block_until_ready(out)

    ref = dam_reference(x, gamma, bn_beta, alpha, beta)
    assert out.shape == (B, C, H * W)
    max_err = float(jnp.max(jnp.abs(out - ref)))
    # Tolerance covers bf16 MXU operands + approximate reciprocal vs f32 ref.
    assert jnp.allclose(out, ref, atol=5e-2, rtol=5e-2), f"max |err| = {max_err}"

    print("KERNEL_OK")
</pallas_src>

<mosaic_0001>
module attributes {stable_mosaic.version = 11 : i64} {
  func.func @dam_kernel(%arg0: i32, %arg1: i32, %arg2: memref<2xf32, #tpu.memory_space<smem>>, %arg3: memref<8x2xf32, #tpu.memory_space<vmem>>, %arg4: memref<1x8x256xf32, #tpu.memory_space<vmem>>, %arg5: memref<1x8x256xf32, #tpu.memory_space<vmem>>, %arg6: memref<8x256xbf16, #tpu.memory_space<vmem>>) attributes {dimension_semantics = [#tpu.dimension_semantics<parallel>, #tpu.dimension_semantics<arbitrary>], iteration_bounds = array<i64: 2, 2>, scalar_prefetch = 0 : i64, scratch_operands = 1 : i64, tpu.core_type = #tpu.core_type<tc>, window_params = [{transform_indices = @transform_0, window_bounds = array<i64: 2>}, {pipeline_mode = #tpu.pipeline_mode<synchronous>, transform_indices = @transform_1, window_bounds = array<i64: 8, 2>}, {transform_indices = @transform_2, window_bounds = array<i64: 1, 8, 256>}, {transform_indices = @transform_3, window_bounds = array<i64: 1, 8, 256>}]} {
    %c0 = arith.constant 0 : index
    %0 = memref.load %arg2[%c0] : memref<2xf32, #tpu.memory_space<smem>>
    %c1 = arith.constant 1 : index
    %1 = memref.load %arg2[%c1] : memref<2xf32, #tpu.memory_space<smem>>
    %c0_i32 = arith.constant 0 : i32
    %2 = arith.cmpi eq, %arg1, %c0_i32 : i32
    %3 = arith.extui %2 : i1 to i32
    %c0_i32_0 = arith.constant 0 : i32
    %4 = arith.cmpi ne, %3, %c0_i32_0 : i32
    scf.if %4 {
      %c0_12 = arith.constant 0 : index
      %c0_13 = arith.constant 0 : index
      %c0_14 = arith.constant 0 : index
      %34 = vector.load %arg4[%c0_12, %c0_13, %c0_14] : memref<1x8x256xf32, #tpu.memory_space<vmem>>, vector<1x8x256xf32>
      %35 = vector.shape_cast %34 : vector<1x8x256xf32> to vector<8x256xf32>
      %c0_15 = arith.constant 0 : index
      %c0_16 = arith.constant 0 : index
      %36 = vector.load %arg3[%c0_15, %c0_16] : memref<8x2xf32, #tpu.memory_space<vmem>>, vector<8x1xf32>
      %c0_17 = arith.constant 0 : index
      %c1_18 = arith.constant 1 : index
      %37 = vector.load %arg3[%c0_17, %c1_18] : memref<8x2xf32, #tpu.memory_space<vmem>>, vector<8x1xf32>
      %38 = vector.broadcast %36 : vector<8x1xf32> to vector<8x256xf32>
      %39 = arith.mulf %35, %38 : vector<8x256xf32>
      %40 = vector.broadcast %37 : vector<8x1xf32> to vector<8x256xf32>
      %41 = arith.addf %39, %40 : vector<8x256xf32>
      %cst_19 = arith.constant 0.000000e+00 : f32
      %42 = vector.broadcast %cst_19 : f32 to vector<8x256xf32>
      %43 = arith.maximumf %41, %42 : vector<8x256xf32>
      %44 = arith.truncf %43 : vector<8x256xf32> to vector<8x256xbf16>
      %c0_20 = arith.constant 0 : index
      %c0_21 = arith.constant 0 : index
      %45 = vector.load %arg6[%c0_20, %c0_21] : memref<8x256xbf16, #tpu.memory_space<vmem>>, vector<8x256xbf16>
      tpu.vector_store %arg6[%c0_20, %c0_21], %44 {strides = array<i32>} : memref<8x256xbf16, #tpu.memory_space<vmem>>, vector<8x256xbf16>,
    } else {
    }
    %c0_1 = arith.constant 0 : index
    %c0_2 = arith.constant 0 : index
    %5 = vector.load %arg6[%c0_1, %c0_2] : memref<8x256xbf16, #tpu.memory_space<vmem>>, vector<8x256xbf16>
    %c128_i32 = arith.constant 128 : i32
    %6 = arith.muli %arg1, %c128_i32 : i32
    %7 = tpu.assume_multiple %6, 128 : i32
    %c0_3 = arith.constant 0 : index
    %8 = arith.index_cast %7 : i32 to index
    %9 = vector.load %arg6[%c0_3, %8] : memref<8x256xbf16, #tpu.memory_space<vmem>>, vector<8x128xbf16>
    "tpu.trace_start"() <{level = 10 : i32, message = "cj,ck->jk"}> : () -> ()
    %cst = arith.constant dense<0.000000e+00> : vector<128x256xf32>
    %10 = tpu.matmul %9, %5, %cst {dimension_numbers = #tpu.dot_dimension_numbers<[0], [0], [1], [1], [0, 1, 1, 1], [], []>} : vector<8x128xbf16>, vector<8x256xbf16>, vector<128x256xf32> -> vector<128x256xf32>
    "tpu.trace_stop"() : () -> ()
    %cst_4 = arith.constant dense<0xFF800000> : vector<128xf32>
    %11 = vector.multi_reduction <maximumf>, %10, %cst_4 [1] : vector<128x256xf32> to vector<128xf32>
    %12 = vector.shape_cast %11 : vector<128xf32> to vector<128x1xf32>
    %13 = vector.broadcast %12 : vector<128x1xf32> to vector<128x256xf32>
    %14 = arith.subf %10, %13 : vector<128x256xf32>
    %15 = math.exp %14 : vector<128x256xf32>
    %cst_5 = arith.constant dense<0.000000e+00> : vector<128xf32>
    %16 = vector.multi_reduction <add>, %15, %cst_5 [1] : vector<128x256xf32> to vector<128xf32>
    %17 = vector.shape_cast %16 : vector<128xf32> to vector<128x1xf32>
    %18 = tpu.reciprocal %17 {approx = true} : vector<128x1xf32> -> vector<128x1xf32>
    %19 = vector.broadcast %0 : f32 to vector<128x1xf32>
    %20 = arith.mulf %18, %19 : vector<128x1xf32>
    %21 = vector.broadcast %20 : vector<128x1xf32> to vector<128x256xf32>
    %22 = arith.mulf %15, %21 : vector<128x256xf32>
    %23 = arith.truncf %22 : vector<128x256xf32> to vector<128x256xbf16>
    "tpu.trace_start"() <{level = 10 : i32, message = "cj,jk->ck"}> : () -> ()
    %cst_6 = arith.constant dense<0.000000e+00> : vector<8x256xf32>
    %24 = tpu.matmul %9, %23, %cst_6 {dimension_numbers = #tpu.dot_dimension_numbers<[1], [0], [0], [1], [0, 0, 1, 1], [], []>} : vector<8x128xbf16>, vector<128x256xbf16>, vector<8x256xf32> -> vector<8x256xf32>
    %c0_i32_7 = arith.constant 0 : i32
    "tpu.trace_stop"() : () -> ()
    %25 = arith.cmpi eq, %arg1, %c0_i32_7 : i32
    %26 = arith.extui %25 : i1 to i32
    %c0_i32_8 = arith.constant 0 : i32
    %27 = arith.cmpi ne, %26, %c0_i32_8 : i32
    scf.if %27 {
      %c0_12 = arith.constant 0 : index
      %c0_13 = arith.constant 0 : index
      %c0_14 = arith.constant 0 : index
      %34 = vector.load %arg4[%c0_12, %c0_13, %c0_14] : memref<1x8x256xf32, #tpu.memory_space<vmem>>, vector<1x8x256xf32>
      %35 = vector.shape_cast %34 : vector<1x8x256xf32> to vector<8x256xf32>
      %cst_15 = arith.constant 2.000000e+00 : f32
      %36 = vector.broadcast %cst_15 : f32 to vector<8x256xf32>
      %37 = arith.mulf %36, %35 : vector<8x256xf32>
      %38 = arith.addf %24, %37 : vector<8x256xf32>
      %c0_16 = arith.constant 0 : index
      %c0_17 = arith.constant 0 : index
      %c0_18 = arith.constant 0 : index
      %39 = vector.load %arg5[%c0_16, %c0_17, %c0_18] : memref<1x8x256xf32, #tpu.memory_space<vmem>>, vector<1x8x256xf32>
      %40 = vector.shape_cast %39 : vector<1x8x256xf32> to vector<8x256xf32>
      %41 = vector.shape_cast %38 : vector<8x256xf32> to vector<1x8x256xf32>
      tpu.vector_store %arg5[%c0_16, %c0_17, %c0_18], %41 {strides = array<i32>} : memref<1x8x256xf32, #tpu.memory_space<vmem>>, vector<1x8x256xf32>,
    } else {
    }
    %c0_i32_9 = arith.constant 0 : i32
    %28 = arith.cmpi sgt, %arg1, %c0_i32_9 : i32
    %29 = arith.extui %28 : i1 to i32
    %c0_i32_10 = arith.constant 0 : i32
    %30 = arith.cmpi ne, %29, %c0_i32_10 : i32
    scf.if %30 {
      %c0_12 = arith.constant 0 : index
      %c0_13 = arith.constant 0 : index
      %c0_14 = arith.constant 0 : index
      %34 = vector.load %arg5[%c0_12, %c0_13, %c0_14] : memref<1x8x256xf32, #tpu.memory_space<vmem>>, vector<1x8x256xf32>
      %35 = vector.shape_cast %34 : vector<1x8x256xf32> to vector<8x256xf32>
      %36 = arith.addf %35, %24 : vector<8x256xf32>
      %c0_15 = arith.constant 0 : index
      %c0_16 = arith.constant 0 : index
      %c0_17 = arith.constant 0 : index
      %37 = vector.load %arg5[%c0_15, %c0_16, %c0_17] : memref<1x8x256xf32, #tpu.memory_space<vmem>>, vector<1x8x256xf32>
      %38 = vector.shape_cast %37 : vector<1x8x256xf32> to vector<8x256xf32>
      %39 = vector.shape_cast %36 : vector<8x256xf32> to vector<1x8x256xf32>
      tpu.vector_store %arg5[%c0_15, %c0_16, %c0_17], %39 {strides = array<i32>} : memref<1x8x256xf32, #tpu.memory_space<vmem>>, vector<1x8x256xf32>,
    } else {
    }
    %c1_i32 = arith.constant 1 : i32
    %31 = arith.cmpi eq, %arg1, %c1_i32 : i32
    %32 = arith.extui %31 : i1 to i32
    %c0_i32_11 = arith.constant 0 : i32
    %33 = arith.cmpi ne, %32, %c0_i32_11 : i32
    scf.if %33 {
      %c0_12 = arith.constant 0 : index
      %c0_13 = arith.constant 0 : index
      %c0_14 = arith.constant 0 : index
      %34 = vector.load %arg4[%c0_12, %c0_13, %c0_14] : memref<1x8x256xf32, #tpu.memory_space<vmem>>, vector<1x8x256xf32>
      %35 = vector.shape_cast %34 : vector<1x8x256xf32> to vector<8x256xf32>
      %36 = arith.truncf %35 : vector<8x256xf32> to vector<8x256xbf16>
      "tpu.trace_start"() <{level = 10 : i32, message = "cl,dl->cd"}> : () -> ()
      %cst_15 = arith.constant dense<0.000000e+00> : vector<8x8xf32>
      %37 = tpu.matmul %36, %36, %cst_15 {dimension_numbers = #tpu.dot_dimension_numbers<[1], [1], [0], [0], [0, 0, 1, 0], [], []>} : vector<8x256xbf16>, vector<8x256xbf16>, vector<8x8xf32> -> vector<8x8xf32>
      "tpu.trace_stop"() : () -> ()
      %cst_16 = arith.constant dense<0xFF800000> : vector<8xf32>
      %38 = vector.multi_reduction <maximumf>, %37, %cst_16 [1] : vector<8x8xf32> to vector<8xf32>
      %39 = vector.shape_cast %38 : vector<8xf32> to vector<8x1xf32>
      %40 = vector.broadcast %39 : vector<8x1xf32> to vector<8x8xf32>
      %41 = arith.subf %37, %40 : vector<8x8xf32>
      %42 = math.exp %41 : vector<8x8xf32>
      %cst_17 = arith.constant dense<0.000000e+00> : vector<8xf32>
      %43 = vector.multi_reduction <add>, %42, %cst_17 [1] : vector<8x8xf32> to vector<8xf32>
      %44 = vector.shape_cast %43 : vector<8xf32> to vector<8x1xf32>
      %45 = tpu.reciprocal %44 {approx = true} : vector<8x1xf32> -> vector<8x1xf32>
      %46 = arith.truncf %42 : vector<8x8xf32> to vector<8x8xbf16>
      "tpu.trace_start"() <{level = 10 : i32, message = "cd,dl->cl"}> : () -> ()
      %cst_18 = arith.constant dense<0.000000e+00> : vector<8x256xf32>
      %47 = tpu.matmul %46, %36, %cst_18 {dimension_numbers = #tpu.dot_dimension_numbers<[1], [0], [0], [1], [0, 0, 1, 1], [], []>} : vector<8x8xbf16>, vector<8x256xbf16>, vector<8x256xf32> -> vector<8x256xf32>
      "tpu.trace_stop"() : () -> ()
      %48 = vector.broadcast %1 : f32 to vector<8x1xf32>
      %49 = arith.mulf %45, %48 : vector<8x1xf32>
      %50 = vector.broadcast %49 : vector<8x1xf32> to vector<8x256xf32>
      %51 = arith.mulf %47, %50 : vector<8x256xf32>
      %c0_19 = arith.constant 0 : index
      %c0_20 = arith.constant 0 : index
      %c0_21 = arith.constant 0 : index
      %52 = vector.load %arg5[%c0_19, %c0_20, %c0_21] : memref<1x8x256xf32, #tpu.memory_space<vmem>>, vector<1x8x256xf32>
      %53 = vector.shape_cast %52 : vector<1x8x256xf32> to vector<8x256xf32>
      %54 = arith.addf %53, %51 : vector<8x256xf32>
      %c0_22 = arith.constant 0 : index
      %c0_23 = arith.constant 0 : index
      %c0_24 = arith.constant 0 : index
      %55 = vector.load %arg5[%c0_22, %c0_23, %c0_24] : memref<1x8x256xf32, #tpu.memory_space<vmem>>, vector<1x8x256xf32>
      %56 = vector.shape_cast %55 : vector<1x8x256xf32> to vector<8x256xf32>
      %57 = vector.shape_cast %54 : vector<8x256xf32> to vector<1x8x256xf32>
      tpu.vector_store %arg5[%c0_22, %c0_23, %c0_24], %57 {strides = array<i32>} : memref<1x8x256xf32, #tpu.memory_space<vmem>>, vector<1x8x256xf32>,
    } else {
    }
    return
  }
  func.func @transform_0(%arg0: i32, %arg1: i32) -> i32 {
    %c0_i32 = arith.constant 0 : i32
    %c0_i32_0 = arith.constant 0 : i32
    return %c0_i32 : i32
  }
  func.func @transform_1(%arg0: i32, %arg1: i32) -> (i32, i32) {
    %c0_i32 = arith.constant 0 : i32
    %c0_i32_0 = arith.constant 0 : i32
    %c0_i32_1 = arith.constant 0 : i32
    return %c0_i32, %c0_i32_0 : i32, i32
  }
  func.func @transform_2(%arg0: i32, %arg1: i32) -> (i32, i32, i32) {
    %c0_i32 = arith.constant 0 : i32
    %c0_i32_0 = arith.constant 0 : i32
    %c0_i32_1 = arith.constant 0 : i32
    return %arg0, %c0_i32, %c0_i32_0 : i32, i32, i32
  }
  func.func @transform_3(%arg0: i32, %arg1: i32) -> (i32, i32, i32) {
    %c0_i32 = arith.constant 0 : i32
    %c0_i32_0 = arith.constant 0 : i32
    %c0_i32_1 = arith.constant 0 : i32
    return %arg0, %c0_i32, %c0_i32_0 : i32, i32, i32
  }
}

</mosaic_0001>

<llo_original>
// kernel: tpu_custom_call.1
$region0: #{tpu_custom_call.1}
  #allocation0 [shape = 'u32[]', space=smem, size = 0x4, offset = 0x4, fixed_abs, tag = 'smem constant byte address 0x4 - core index']
  #allocation1 [shape = 'u32[144,128]{1,0:T(1,128)}', space=vmem, size = 0x12000, scoped, tag = 'internal scratch']
  #allocation2 [shape = 'bf16[8,256]{1,0:T(8,128)(2,1)}', space=vmem, size = 0x1000, scoped, tag = 'scratch operand']
  %s0 = inlined_call_operand.vmem [shape: f32[2], index: 0, kind: input, shape index: {}]
  %s1 = inlined_call_operand.vmem [shape: f32[8,2], index: 1, kind: input, shape index: {}]
  %s2 = inlined_call_operand.hbm [shape: f32[2,8,256], index: 2, kind: input, shape index: {}]
  %s3 = inlined_call_operand.hbm [shape: f32[2,8,256], index: 3, kind: output, shape index: {}]
  %s4 = sld [smem:[#allocation0]]
  $region69: #{tpu_custom_call.1} parent=0
    _
  %s6 = ssub.s32 1, %s4
  %s7 = scalar_select 0, %s6, %s4
  $region1: #{tpu_custom_call.1} parent=0
    #allocation3 [shape = 'u8[512]{0}', space=smem, size = 0x200, scoped, tag = 'input window, operand 0, single buffered']
    #allocation4 [shape = 's32[2]{0}', space=sflag, size = 0x8, scoped, tag = 'scoped memory for tpu_custom_call.1']
    #allocation5 [shape = 's32[2]{0}', space=sflag, size = 0x8, scoped, tag = 'scoped memory for tpu_custom_call.1']
    #allocation6 [shape = 's32[2]{0}', space=sflag, size = 0x8, scoped, tag = 'scoped memory for tpu_custom_call.1']
    #allocation7 [shape = 'u8[16384]{0}', space=vmem, size = 0x4000, scoped, tag = 'input window, operand 2']
    #allocation8 [shape = 'u8[16384]{0}', space=vmem, size = 0x4000, scoped, tag = 'output window, operand 0']
    %8 = vsyncpa [#allocation6], 0
    %9 = vsyncpa [#allocation4], 0
    %s10 = scalar_lea.sflag [#allocation4], 1
    %11 = vsyncpa %s10, 0
    %12 = vsyncpa [#allocation5], 0
    %s13 = scalar_lea.sflag [#allocation5], 1
    %14 = vsyncpa %s13, 0
    loop: start=0, step=1, limit=6
    $region2: #{tpu_custom_call.1} parent=1 // loop_pre_header
      _
    $region3: #{tpu_custom_call.1} parent=1 // loop_header
      %s16 = sphi 0, %s20
      %p17 = scmp.ge.s32.totalorder %s16, 6
      %s23 = sphi 0, %s35
      %s24 = sphi 0, %s31
      %s25 = sphi 0, %s23
      %s26 = sphi 0, %s24
      %s27 = sphi 0, %s25
      %s28 = sphi 0, %s26
      %s36 = sphi 0, %s36
      %s38 = sphi 0, %s36
      %s39 = sphi 0, %s38
      %s53 = sphi 0, %s39
      %s57 = sphi 0, %s57
      %s59 = sphi 0, %s57
      %s60 = sphi 0, %s59
      %s74 = sphi 0, %s60
      %s80 = sphi 0, %s82
      %s83 = sphi 0, %s80
      %s84 = sphi 0, %s83
      %s100 = sphi 0, %s84
      %s106 = sphi 0, %s108
      %s109 = sphi 0, %s106
      %s110 = sphi 0, %s109
      %s126 = sphi 0, %s110
    $region4: #{tpu_custom_call.1} parent=1 // loop_header_branch
      %19 = sbr.rel (%p17) target = $region8
    $region5: #{tpu_custom_call.1} parent=1 // loop_body
      %s21 = ssub.s32 %s16, 1
      %s22 = ssub.s32 %s16, 2
      %s29 = sadd.s32 1, %s24
      %p30 = scmp.ge.s32.totalorder %s29, 2
      %s31 = scalar_select %p30, 0, %s29
      %s32 = sadd.s32 1, %s23
      %s33 = scalar_select %p30, %s32, %s23
      %p34 = scmp.ge.s32.totalorder %s33, 2
      %s35 = scalar_select %p34, 0, %s33
      %s37 = sadd.s32 %s36, 1
      %p40 = scmp.eq.s32.totalorder %s16, 3
      %p41 = scmp.ne.s32.totalorder %s36, %s38
      %p42 = scmp.eq.s32.totalorder %s16, 0
      %p43 = por %p41, %p42
      %p44 = scmp.ne.s32.totalorder %s36, %s38
      %p45 = scmp.eq.s32.totalorder %s21, 3
      %p46 = por %p44, %p45
      %p47 = scmp.ne.s32.totalorder %s38, %s39
      %p48 = scmp.eq.s32.totalorder %s21, 0
      %p49 = por %p47, %p48
      %p50 = scmp.ne.s32.totalorder %s38, %s39
      %p51 = scmp.eq.s32.totalorder %s22, 3
      %p52 = por %p50, %p51
      %p54 = scmp.ne.s32.totalorder %s39, %s53
      %p55 = scmp.eq.s32.totalorder %s22, 0
      %p56 = por %p54, %p55
      %s58 = sadd.s32 %s57, 1
      %p61 = scmp.eq.s32.totalorder %s16, 3
      %p62 = scmp.ne.s32.totalorder %s57, %s59
      %p63 = scmp.eq.s32.totalorder %s16, 0
      %p64 = por %p62, %p63
      %p65 = scmp.ne.s32.totalorder %s57, %s59
      %p66 = scmp.eq.s32.totalorder %s21, 3
      %p67 = por %p65, %p66
      %p68 = scmp.ne.s32.totalorder %s59, %s60
      %p69 = scmp.eq.s32.totalorder %s21, 0
      %p70 = por %p68, %p69
      %p71 = scmp.ne.s32.totalorder %s59, %s60
      %p72 = scmp.eq.s32.totalorder %s22, 3
      %p73 = por %p71, %p72
      %p75 = scmp.ne.s32.totalorder %s60, %s74
      %p76 = scmp.eq.s32.totalorder %s22, 0
      %p77 = por %p75, %p76
      %s78 = ssub.s32 %s23, %s35
      %p79 = scmp.eq.s32.totalorder %s78, 0
      %s81 = sadd.s32 %s80, 1
      %s82 = scalar_select %p79, %s80, %s81
      %p85 = pneg %p79
      %p86 = scmp.eq.s32.totalorder %s16, 3
      %p87 = por %p85, %p86
      %p88 = scmp.ne.s32.totalorder %s80, %s83
      %p89 = scmp.eq.s32.totalorder %s16, 0
      %p90 = por %p88, %p89
      %p91 = scmp.ne.s32.totalorder %s80, %s83
      %p92 = scmp.eq.s32.totalorder %s21, 3
      %p93 = por %p91, %p92
      %p94 = scmp.ne.s32.totalorder %s83, %s84
      %p95 = scmp.eq.s32.totalorder %s21, 0
      %p96 = por %p94, %p95
      %p97 = scmp.ne.s32.totalorder %s83, %s84
      %p98 = scmp.eq.s32.totalorder %s22, 3
      %p99 = por %p97, %p98
      %p101 = scmp.ne.s32.totalorder %s84, %s100
      %p102 = scmp.eq.s32.totalorder %s22, 0
      %p103 = por %p101, %p102
      %s104 = ssub.s32 %s23, %s35
      %p105 = scmp.eq.s32.totalorder %s104, 0
      %s107 = sadd.s32 %s106, 1
      %s108 = scalar_select %p105, %s106, %s107
      %p111 = pneg %p105
      %p112 = scmp.eq.s32.totalorder %s16, 3
      %p113 = por %p111, %p112
      %p114 = scmp.ne.s32.totalorder %s106, %s109
      %p115 = scmp.eq.s32.totalorder %s16, 0
      %p116 = por %p114, %p115
      %p117 = scmp.ne.s32.totalorder %s106, %s109
      %p118 = scmp.eq.s32.totalorder %s21, 3
      %p119 = por %p117, %p118
      %p120 = scmp.ne.s32.totalorder %s109, %s110
      %p121 = scmp.eq.s32.totalorder %s21, 0
      %p122 = por %p120, %p121
      %p123 = scmp.ne.s32.totalorder %s109, %s110
      %p124 = scmp.eq.s32.totalorder %s22, 3
      %p125 = por %p123, %p124
      %p127 = scmp.ne.s32.totalorder %s110, %s126
      %p128 = scmp.eq.s32.totalorder %s22, 0
      %p129 = por %p127, %p128
      %p130 = scmp.le.s32.totalorder 1, %s16
      %p131 = scmp.lt.s32.totalorder %s16, 5
      %p132 = pnand %p130, %p131
      %p133 = pneg %p132
      // Predicated region
      $region9: #{tpu_custom_call.1} parent=5 // pred_check
        _
      $region10: #{tpu_custom_call.1} parent=5 // pred_check_branch
        %135 = sbr.rel (%p132) target = $region12
      $region11: #{tpu_custom_call.1} parent=5 // pred_region
        %s136 = ssub.s32 %s16, 1
        // Predicated region
        $region13: #{tpu_custom_call.1} parent=11 // pred_check
          %p137 = pneg %p49
        $region14: #{tpu_custom_call.1} parent=11 // pred_check_branch
          %139 = sbr.rel (%p137) target = $region16
        $region15: #{tpu_custom_call.1} parent=11 // pred_region
          %s141 = ssub.s32 16, 16
          %142 = vsyncadd [#allocation6], %s141
          %s144 = sshll.u32 %s0, 4
          %s145 = int_to_ptr.vmem [resolvable:$true] %s144
          %147 = dma.vmem_to_smem %s145, 16, [#allocation3], [#allocation6]
        $region16: #{tpu_custom_call.1} parent=11 // pred_fallthru
          _
        // Predicated region
        $region17: #{tpu_custom_call.1} parent=11 // pred_check
          %p148 = pneg %p70
        $region18: #{tpu_custom_call.1} parent=11 // pred_check_branch
          %150 = sbr.rel (%p148) target = $region20
        $region19: #{tpu_custom_call.1} parent=11 // pred_region
          _
        $region20: #{tpu_custom_call.1} parent=11 // pred_fallthru
          _
      $region12: #{tpu_custom_call.1} parent=5 // pred_fallthru
        _
      %p151 = scmp.lt.s32.totalorder %s16, 4
      // Predicated region
      $region21: #{tpu_custom_call.1} parent=5 // pred_check
        %p152 = pneg %p151
      $region22: #{tpu_custom_call.1} parent=5 // pred_check_branch
        %154 = sbr.rel (%p152) target = $region24
      $region23: #{tpu_custom_call.1} parent=5 // pred_region
        // Predicated region
        $region25: #{tpu_custom_call.1} parent=23 // pred_check
          %p155 = pneg %p90
        $region26: #{tpu_custom_call.1} parent=23 // pred_check_branch
          %157 = sbr.rel (%p155) target = $region28
        $region27: #{tpu_custom_call.1} parent=23 // pred_region
          %s158 = sand.u32 %s80, 1
          %s159 = scalar_lea.sflag [#allocation4], %s158
          %s160 = sand.u32 %s80, 1
          %s161 = smul.addr %s160, 16
          %s162 = scalar_lea.vmem [#allocation7], %s161
          %s164 = ssub.s32 256, 256
          %165 = vsyncadd %s159, %s164
          %s166 = smul.addr %s23, 2
          %s167 = smul.addr %s166, 128
          %s168 = scalar_lea.hbm %s2, %s167
          %s170 = sshll.u32 %s162, 4
          %s171 = int_to_ptr.vmem [resolvable:$true] %s170
          %173 = dma.hbm_to_vmem [thread:$0]  %s168, 256, %s171, %s159
        $region28: #{tpu_custom_call.1} parent=23 // pred_fallthru
          _
      $region24: #{tpu_custom_call.1} parent=5 // pred_fallthru
        _
      %p174 = scmp.le.s32.totalorder 1, %s16
      %p175 = scmp.lt.s32.totalorder %s16, 5
      %p176 = pnand %p174, %p175
      %p177 = pneg %p176
      // Predicated region
      $region29: #{tpu_custom_call.1} parent=5 // pred_check
        _
      $region30: #{tpu_custom_call.1} parent=5 // pred_check_branch
        %179 = sbr.rel (%p176) target = $region32
      $region31: #{tpu_custom_call.1} parent=5 // pred_region
        %s180 = ssub.s32 %s16, 1
        // Predicated region
        $region33: #{tpu_custom_call.1} parent=31 // pred_check
          %p181 = pneg %p49
        $region34: #{tpu_custom_call.1} parent=31 // pred_check_branch
          %183 = sbr.rel (%p181) target = $region36
        $region35: #{tpu_custom_call.1} parent=31 // pred_region
          %184 = dma.done [#allocation6], 16
        $region36: #{tpu_custom_call.1} parent=31 // pred_fallthru
          _
        %s185 = sand.u32 %s83, 1
        %s186 = scalar_lea.sflag [#allocation4], %s185
        %s187 = sand.u32 %s83, 1
        %s188 = smul.addr %s187, 16
        %s189 = scalar_lea.vmem [#allocation7], %s188
        // Predicated region
        $region37: #{tpu_custom_call.1} parent=31 // pred_check
          %p190 = pneg %p96
        $region38: #{tpu_custom_call.1} parent=31 // pred_check_branch
          %192 = sbr.rel (%p190) target = $region40
        $region39: #{tpu_custom_call.1} parent=31 // pred_region
          %193 = dma.done %s186, 256
        $region40: #{tpu_custom_call.1} parent=31 // pred_fallthru
          _
        %194 = sfence
        %p195 = pneg %p49
        %p196 = pneg %p46
        %p197 = pneg %p70
        %p198 = pneg %p67
        %s199 = sand.u32 %s83, 1
        %s200 = scalar_lea.sflag [#allocation4], %s199
        %s201 = sand.u32 %s83, 1
        %s202 = smul.addr %s201, 16
        %s203 = scalar_lea.vmem [#allocation7], %s202
        %p204 = pneg %p96
        %p205 = pneg %p93
        %p206 = pneg %p122
        %p207 = pneg %p119
        %s208 = sand.u32 %s109, 1
        %s209 = scalar_lea.sflag [#allocation5], %s208
        %s210 = sand.u32 %s109, 1
        %s211 = smul.addr %s210, 16
        %s212 = scalar_lea.vmem [#allocation8], %s211
        %s214 = sld [smem:[#allocation3]]
        %s215 = sld [smem:[#allocation3 + $0x1]]
        %p216 = scmp.eq.s32.totalorder %s26, 0
        // Predicated region
        $region41: #{tpu_custom_call.1} parent=31 // pred_check
          %p217 = pneg %p216
        $region42: #{tpu_custom_call.1} parent=31 // pred_check_branch
          %219 = sbr.rel (%p217) target = $region44
        $region43: #{tpu_custom_call.1} parent=31 // pred_region
          %v220 = vld [vmem:[%s189] sm:$0xff]
          %v221 = vld [vmem:[%s189 + $0x8] sm:$0xff]
          %v222 = vld [vmem:[%s1] sm:$0xff]
          %224 = vset.pattern.permute.xlu0 0
          %225 = vperm.xlu0 %224, %v222
          %v226 = vpop.permute.xlu0 %225
          %v228 = vmul.f32 %v220, %v226
          %v229 = vmul.f32 %v221, %v226
          %230 = vset.pattern.permute.xlu0 1
          %231 = vperm.xlu0 %230, %v222
          %v232 = vpop.permute.xlu0 %231
          %v234 = vadd.f32 %v228, %v232
          %v235 = vadd.f32 %v229, %v232
          %v236 = vmax.f32 %v234, 0.0
          %v237 = vmax.f32 %v235, 0.0
          %v238 = vpack.c.bf16 %v236, %v236
          %v239 = vpack.c.bf16 %v237, %v237
          %v242 = vunpack.c.l.b16 %v238
          %v243 = vunpack.c.l.b16 %v239
          %v244 = vpack.c.b16 %v243, %v242
          %246 = vst [vmem:[#allocation2] sm:$0xff] %v244
        $region44: #{tpu_custom_call.1} parent=31 // pred_fallthru
          _
        %v247 = vld [vmem:[#allocation2] sm:$0xff]
        %s248 = smul.u32 %s26, 128
        %s249 = sshra.s32 %s248, 7
        %s250 = sand.u32 %s248, 127
        %s251 = smul.addr %s249, 4
        %s252 = scalar_lea.vmem [#allocation2], %s251
        %v253 = vld [vmem:[%s252] sm:$0xf]
        %254 = vxpose.xlu0.c.b16.start [1/8] %v253, 128
        %255 = vxpose.xlu0.c.b16.cont [2/8] 0, 128
        %256 = vxpose.xlu0.c.b16.cont [3/8] 0, 128
        %257 = vxpose.xlu0.c.b16.cont [4/8] 0, 128
        %258 = vxpose.xlu0.c.b16.cont [5/8] 0, 128
        %259 = vxpose.xlu0.c.b16.cont [6/8] 0, 128
        %260 = vxpose.xlu0.c.b16.cont [7/8] 0, 128
        %261 = vxpose.xlu0.c.b16.end [8/8] 0, 128
        %v262 = vpop.trf.xlu0
        %v263 = vpop.trf.xlu0
        %v264 = vpop.trf.xlu0
        %v265 = vpop.trf.xlu0
        %v266 = vpop.trf.xlu0
        %v267 = vpop.trf.xlu0
        %v268 = vpop.trf.xlu0
        %v269 = vpop.trf.xlu0
        %v271 = vunpack.c.l.b16 %v247
        %v272 = vunpack.c.h.b16 %v247
        %v273 = vpack.c.b16 %v271, %v271
        %v274 = vpack.c.b16 %v272, %v272
        %vm275 = vcmask 64512
        %v277 = vsel %vm275, %v262, 0
        %v280 = vsel %vm275, %v263, 0
        %v283 = vsel %vm275, %v264, 0
        %v286 = vsel %vm275, %v265, 0
        %v289 = vsel %vm275, %v266, 0
        %v292 = vsel %vm275, %v267, 0
        %v295 = vsel %vm275, %v268, 0
        %v298 = vsel %vm275, %v269, 0
        %vm300 = vcmask 1043456
        %v302 = vsel %vm300, %v273, 0
        %v305 = vsel %vm300, %v274, 0
        %307 = vmatprep.subr.bf16.mxu0 %v305
        %308 = vmatpush1.bf16.msra.mxu0 %v302
        %309 = vmatprep.subr.bf16.mxu0 0
        %310 = vmatpush1.bf16.msra.mxu0 0
        %311 = vmatprep.subr.bf16.mxu0 0
        %312 = vmatpush1.bf16.msra.mxu0 0
        %313 = vmatprep.subr.bf16.mxu0 0
        %314 = vmatpush1.bf16.msra.mxu0 0
        %315 = vmatprep.subr.bf16.mxu0 0
        %316 = vmatpush1.bf16.msra.mxu0 0
        %317 = vmatprep.subr.bf16.mxu0 0
        %318 = vmatpush1.bf16.msra.mxu0 0
        %319 = vmatprep.subr.bf16.mxu0 0
        %320 = vmatpush1.bf16.msra.mxu0 0
        %321 = vmatprep.subr.bf16.mxu0 0
        %322 = vmatpush1.bf16.msra.mxu0 0
        %323 = vmatprep.subr.bf16.mxu0 0
        %324 = vmatpush1.bf16.msra.mxu0 0
        %325 = vmatprep.subr.bf16.mxu0 0
        %326 = vmatpush1.bf16.msra.mxu0 0
        %327 = vmatprep.subr.bf16.mxu0 0
        %328 = vmatpush1.bf16.msra.mxu0 0
        %329 = vmatprep.subr.bf16.mxu0 0
        %330 = vmatpush1.bf16.msra.mxu0 0
        %331 = vmatprep.subr.bf16.mxu0 0
        %332 = vmatpush1.bf16.msra.mxu0 0
        %333 = vmatprep.subr.bf16.mxu0 0
        %334 = vmatpush1.bf16.msra.mxu0 0
        %335 = vmatprep.subr.bf16.mxu0 0
        %336 = vmatpush1.bf16.msra.mxu0 0
        %337 = vmatprep.subr.bf16.mxu0 0
        %338 = vmatpush1.bf16.msra.mxu0 0
        %339 = vmatprep.mubr.bf16.mxu0 0
        %340 = vmatmul.mubr.bf16.gmra.mrb[0].mxu0 %v277
        %v341 = vpop.f32.mrb[0].mxu0
        %v342 = vadd.f32 0.0, %v341
        %v343 = vpop.f32.mrb[0].mxu0
        %v344 = vadd.f32 0.0, %v343
        %v345 = vpop.f32.mrb[0].mxu0
        %v346 = vadd.f32 0.0, %v345
        %v347 = vpop.f32.mrb[0].mxu0
        %v348 = vadd.f32 0.0, %v347
        %349 = vmatprep.mubr.bf16.mxu0 0
        %350 = vmatmul.mubr.bf16.gmra.mrb[0].mxu0 %v280
        %v351 = vpop.f32.mrb[0].mxu0
        %v352 = vadd.f32 0.0, %v351
        %v353 = vpop.f32.mrb[0].mxu0
        %v354 = vadd.f32 0.0, %v353
        %v355 = vpop.f32.mrb[0].mxu0
        %v356 = vadd.f32 0.0, %v355
        %v357 = vpop.f32.mrb[0].mxu0
        %v358 = vadd.f32 0.0, %v357
        %359 = vmatprep.mubr.bf16.mxu0 0
        %360 = vmatmul.mubr.bf16.gmra.mrb[0].mxu0 %v283
        %v361 = vpop.f32.mrb[0].mxu0
        %v362 = vadd.f32 0.0, %v361
        %v363 = vpop.f32.mrb[0].mxu0
        %v364 = vadd.f32 0.0, %v363
        %v365 = vpop.f32.mrb[0].mxu0
        %v366 = vadd.f32 0.0, %v365
        %v367 = vpop.f32.mrb[0].mxu0
        %v368 = vadd.f32 0.0, %v367
        %369 = vmatprep.mubr.bf16.mxu0 0
        %370 = vmatmul.mubr.bf16.gmra.mrb[0].mxu0 %v286
        %v371 = vpop.f32.mrb[0].mxu0
        %v372 = vadd.f32 0.0, %v371
        %v373 = vpop.f32.mrb[0].mxu0
        %v374 = vadd.f32 0.0, %v373
        %v375 = vpop.f32.mrb[0].mxu0
        %v376 = vadd.f32 0.0, %v375
        %v377 = vpop.f32.mrb[0].mxu0
        %v378 = vadd.f32 0.0, %v377
        %379 = vmatprep.mubr.bf16.mxu0 0
        %380 = vmatmul.mubr.bf16.gmra.mrb[0].mxu0 %v289
        %v381 = vpop.f32.mrb[0].mxu0
        %v382 = vadd.f32 0.0, %v381
        %v383 = vpop.f32.mrb[0].mxu0
        %v384 = vadd.f32 0.0, %v383
        %v385 = vpop.f32.mrb[0].mxu0
        %v386 = vadd.f32 0.0, %v385
        %v387 = vpop.f32.mrb[0].mxu0
        %v388 = vadd.f32 0.0, %v387
        %389 = vmatprep.mubr.bf16.mxu0 0
        %390 = vmatmul.mubr.bf16.gmra.mrb[0].mxu0 %v292
        %v391 = vpop.f32.mrb[0].mxu0
        %v392 = vadd.f32 0.0, %v391
        %v393 = vpop.f32.mrb[0].mxu0
        %v394 = vadd.f32 0.0, %v393
        %v395 = vpop.f32.mrb[0].mxu0
        %v396 = vadd.f32 0.0, %v395
        %v397 = vpop.f32.mrb[0].mxu0
        %v398 = vadd.f32 0.0, %v397
        %399 = vmatprep.mubr.bf16.mxu0 0
        %400 = vmatmul.mubr.bf16.gmra.mrb[0].mxu0 %v295
        %v401 = vpop.f32.mrb[0].mxu0
        %v402 = vadd.f32 0.0, %v401
        %v403 = vpop.f32.mrb[0].mxu0
        %v404 = vadd.f32 0.0, %v403
        %v405 = vpop.f32.mrb[0].mxu0
        %v406 = vadd.f32 0.0, %v405
        %v407 = vpop.f32.mrb[0].mxu0
        %v408 = vadd.f32 0.0, %v407
        %409 = vmatprep.mubr.bf16.mxu0 0
        %410 = vmatmul.mubr.bf16.gmra.mrb[0].mxu0 %v298
        %v411 = vpop.f32.mrb[0].mxu0
        %v412 = vadd.f32 0.0, %v411
        %v413 = vpop.f32.mrb[0].mxu0
        %v414 = vadd.f32 0.0, %v413
        %v415 = vpop.f32.mrb[0].mxu0
        %v416 = vadd.f32 0.0, %v415
        %v417 = vpop.f32.mrb[0].mxu0
        %v418 = vadd.f32 0.0, %v417
        %419 = vdwg.mxu0
        %v420 = vmax.f32 %v342, %v344
        %421 = vmax.xlane.f32.xlu0 %v420
        %v422 = vpop.xlane.xlu0 %421
        %v423 = vmax.f32 %v346, %v348
        %424 = vmax.xlane.f32.xlu0 %v423
        %v425 = vpop.xlane.xlu0 %424
        %v426 = vmax.f32 %v352, %v354
        %427 = vmax.xlane.f32.xlu0 %v426
        %v428 = vpop.xlane.xlu0 %427
        %v429 = vmax.f32 %v356, %v358
        %430 = vmax.xlane.f32.xlu0 %v429
        %v431 = vpop.xlane.xlu0 %430
        %v432 = vmax.f32 %v362, %v364
        %433 = vmax.xlane.f32.xlu0 %v432
        %v434 = vpop.xlane.xlu0 %433
        %v435 = vmax.f32 %v366, %v368
        %436 = vmax.xlane.f32.xlu0 %v435
        %v437 = vpop.xlane.xlu0 %436
        %v438 = vmax.f32 %v372, %v374
        %439 = vmax.xlane.f32.xlu0 %v438
        %v440 = vpop.xlane.xlu0 %439
        %v441 = vmax.f32 %v376, %v378
        %442 = vmax.xlane.f32.xlu0 %v441
        %v443 = vpop.xlane.xlu0 %442
        %v444 = vmax.f32 %v382, %v384
        %445 = vmax.xlane.f32.xlu0 %v444
        %v446 = vpop.xlane.xlu0 %445
        %v447 = vmax.f32 %v386, %v388
        %448 = vmax.xlane.f32.xlu0 %v447
        %v449 = vpop.xlane.xlu0 %448
        %v450 = vmax.f32 %v392, %v394
        %451 = vmax.xlane.f32.xlu0 %v450
        %v452 = vpop.xlane.xlu0 %451
        %v453 = vmax.f32 %v396, %v398
        %454 = vmax.xlane.f32.xlu0 %v453
        %v455 = vpop.xlane.xlu0 %454
        %v456 = vmax.f32 %v402, %v404
        %457 = vmax.xlane.f32.xlu0 %v456
        %v458 = vpop.xlane.xlu0 %457
        %v459 = vmax.f32 %v406, %v408
        %460 = vmax.xlane.f32.xlu0 %v459
        %v461 = vpop.xlane.xlu0 %460
        %v462 = vmax.f32 %v412, %v414
        %463 = vmax.xlane.f32.xlu0 %v462
        %v464 = vpop.xlane.xlu0 %463
        %v465 = vmax.f32 %v416, %v418
        %466 = vmax.xlane.f32.xlu0 %v465
        %v467 = vpop.xlane.xlu0 %466
        %v468 = vsub.f32 %v342, %v422
        %v469 = vsub.f32 %v344, %v422
        %v470 = vsub.f32 %v346, %v425
        %v471 = vsub.f32 %v348, %v425
        %v472 = vsub.f32 %v352, %v428
        %v473 = vsub.f32 %v354, %v428
        %v474 = vsub.f32 %v356, %v431
        %v475 = vsub.f32 %v358, %v431
        %v476 = vsub.f32 %v362, %v434
        %v477 = vsub.f32 %v364, %v434
        %v478 = vsub.f32 %v366, %v437
        %v479 = vsub.f32 %v368, %v437
        %v480 = vsub.f32 %v372, %v440
        %v481 = vsub.f32 %v374, %v440
        %v482 = vsub.f32 %v376, %v443
        %v483 = vsub.f32 %v378, %v443
        %v484 = vsub.f32 %v382, %v446
        %v485 = vsub.f32 %v384, %v446
        %v486 = vsub.f32 %v386, %v449
        %v487 = vsub.f32 %v388, %v449
        %v488 = vsub.f32 %v392, %v452
        %v489 = vsub.f32 %v394, %v452
        %v490 = vsub.f32 %v396, %v455
        %v491 = vsub.f32 %v398, %v455
        %v492 = vsub.f32 %v402, %v458
        %v493 = vsub.f32 %v404, %v458
        %v494 = vsub.f32 %v406, %v461
        %v495 = vsub.f32 %v408, %v461
        %v496 = vsub.f32 %v412, %v464
        %v497 = vsub.f32 %v414, %v464
        %v498 = vsub.f32 %v416, %v467
        %v499 = vsub.f32 %v418, %v467
        %v500 = vmul.f32 %v468, 1.442695
        %v501 = vpow.pop %v500
        %v502 = vmul.f32 %v469, 1.442695
        %v503 = vpow.pop %v502
        %v504 = vmul.f32 %v470, 1.442695
        %v505 = vpow.pop %v504
        %v506 = vmul.f32 %v471, 1.442695
        %v507 = vpow.pop %v506
        %v508 = vmul.f32 %v472, 1.442695
        %v509 = vpow.pop %v508
        %v510 = vmul.f32 %v473, 1.442695
        %v511 = vpow.pop %v510
        %v512 = vmul.f32 %v474, 1.442695
        %v513 = vpow.pop %v512
        %v514 = vmul.f32 %v475, 1.442695
        %v515 = vpow.pop %v514
        %v516 = vmul.f32 %v476, 1.442695
        %v517 = vpow.pop %v516
        %v518 = vmul.f32 %v477, 1.442695
        %v519 = vpow.pop %v518
        %v520 = vmul.f32 %v478, 1.442695
        %v521 = vpow.pop %v520
        %v522 = vmul.f32 %v479, 1.442695
        %v523 = vpow.pop %v522
        %v524 = vmul.f32 %v480, 1.442695
        %v525 = vpow.pop %v524
        %v526 = vmul.f32 %v481, 1.442695
        %v527 = vpow.pop %v526
        %v528 = vmul.f32 %v482, 1.442695
        %v529 = vpow.pop %v528
        %v530 = vmul.f32 %v483, 1.442695
        %v531 = vpow.pop %v530
        %v532 = vmul.f32 %v484, 1.442695
        %v533 = vpow.pop %v532
        %v534 = vmul.f32 %v485, 1.442695
        %v535 = vpow.pop %v534
        %v536 = vmul.f32 %v486, 1.442695
        %v537 = vpow.pop %v536
        %v538 = vmul.f32 %v487, 1.442695
        %v539 = vpow.pop %v538
        %v540 = vmul.f32 %v488, 1.442695
        %v541 = vpow.pop %v540
        %v542 = vmul.f32 %v489, 1.442695
        %v543 = vpow.pop %v542
        %v544 = vmul.f32 %v490, 1.442695
        %v545 = vpow.pop %v544
        %v546 = vmul.f32 %v491, 1.442695
        %v547 = vpow.pop %v546
        %v548 = vmul.f32 %v492, 1.442695
        %v549 = vpow.pop %v548
        %v550 = vmul.f32 %v493, 1.442695
        %v551 = vpow.pop %v550
        %v552 = vmul.f32 %v494, 1.442695
        %v553 = vpow.pop %v552
        %v554 = vmul.f32 %v495, 1.442695
        %v555 = vpow.pop %v554
        %v556 = vmul.f32 %v496, 1.442695
        %v557 = vpow.pop %v556
        %v558 = vmul.f32 %v497, 1.442695
        %v559 = vpow.pop %v558
        %v560 = vmul.f32 %v498, 1.442695
        %v561 = vpow.pop %v560
        %v562 = vmul.f32 %v499, 1.442695
        %v563 = vpow.pop %v562
        %v564 = vadd.f32 %v501, %v503
        %565 = vadd.xlane.f32.xlu0 %v564
        %v566 = vpop.xlane.xlu0 %565
        %v567 = vadd.f32 %v505, %v507
        %568 = vadd.xlane.f32.xlu0 %v567
        %v569 = vpop.xlane.xlu0 %568
        %v570 = vadd.f32 %v509, %v511
        %571 = vadd.xlane.f32.xlu0 %v570
        %v572 = vpop.xlane.xlu0 %571
        %v573 = vadd.f32 %v513, %v515
        %574 = vadd.xlane.f32.xlu0 %v573
        %v575 = vpop.xlane.xlu0 %574
        %v576 = vadd.f32 %v517, %v519
        %577 = vadd.xlane.f32.xlu0 %v576
        %v578 = vpop.xlane.xlu0 %577
        %v579 = vadd.f32 %v521, %v523
        %580 = vadd.xlane.f32.xlu0 %v579
        %v581 = vpop.xlane.xlu0 %580
        %v582 = vadd.f32 %v525, %v527
        %583 = vadd.xlane.f32.xlu0 %v582
        %v584 = vpop.xlane.xlu0 %583
        %v585 = vadd.f32 %v529, %v531
        %586 = vadd.xlane.f32.xlu0 %v585
        %v587 = vpop.xlane.xlu0 %586
        %v588 = vadd.f32 %v533, %v535
        %589 = vadd.xlane.f32.xlu0 %v588
        %v590 = vpop.xlane.xlu0 %589
        %v591 = vadd.f32 %v537, %v539
        %592 = vadd.xlane.f32.xlu0 %v591
        %v593 = vpop.xlane.xlu0 %592
        %v594 = vadd.f32 %v541, %v543
        %595 = vadd.xlane.f32.xlu0 %v594
        %v596 = vpop.xlane.xlu0 %595
        %v597 = vadd.f32 %v545, %v547
        %598 = vadd.xlane.f32.xlu0 %v597
        %v599 = vpop.xlane.xlu0 %598
        %v600 = vadd.f32 %v549, %v551
        %601 = vadd.xlane.f32.xlu0 %v600
        %v602 = vpop.xlane.xlu0 %601
        %v603 = vadd.f32 %v553, %v555
        %604 = vadd.xlane.f32.xlu0 %v603
        %v605 = vpop.xlane.xlu0 %604
        %v606 = vadd.f32 %v557, %v559
        %607 = vadd.xlane.f32.xlu0 %v606
        %v608 = vpop.xlane.xlu0 %607
        %v609 = vadd.f32 %v561, %v563
        %610 = vadd.xlane.f32.xlu0 %v609
        %v611 = vpop.xlane.xlu0 %610
        %v612 = vrcp.pop %v566
        %v613 = vrcp.pop %v569
        %v614 = vrcp.pop %v572
        %v615 = vrcp.pop %v575
        %v616 = vrcp.pop %v578
        %v617 = vrcp.pop %v581
        %v618 = vrcp.pop %v584
        %v619 = vrcp.pop %v587
        %v620 = vrcp.pop %v590
        %v621 = vrcp.pop %v593
        %v622 = vrcp.pop %v596
        %v623 = vrcp.pop %v599
        %v624 = vrcp.pop %v602
        %v625 = vrcp.pop %v605
        %v626 = vrcp.pop %v608
        %v627 = vrcp.pop %v611
        %v628 = vstv %s214
        %v629 = vmul.f32 %v612, %v628
        %v630 = vmul.f32 %v613, %v628
        %v631 = vmul.f32 %v614, %v628
        %v632 = vmul.f32 %v615, %v628
        %v633 = vmul.f32 %v616, %v628
        %v634 = vmul.f32 %v617, %v628
        %v635 = vmul.f32 %v618, %v628
        %v636 = vmul.f32 %v619, %v628
        %v637 = vmul.f32 %v620, %v628
        %v638 = vmul.f32 %v621, %v628
        %v639 = vmul.f32 %v622, %v628
        %v640 = vmul.f32 %v623, %v628
        %v641 = vmul.f32 %v624, %v628
        %v642 = vmul.f32 %v625, %v628
        %v643 = vmul.f32 %v626, %v628
        %v644 = vmul.f32 %v627, %v628
        %v645 = vmul.f32 %v501, %v629
        %v646 = vmul.f32 %v503, %v629
        %v647 = vmul.f32 %v505, %v630
        %v648 = vmul.f32 %v507, %v630
        %v649 = vmul.f32 %v509, %v631
        %v650 = vmul.f32 %v511, %v631
        %v651 = vmul.f32 %v513, %v632
        %v652 = vmul.f32 %v515, %v632
        %v653 = vmul.f32 %v517, %v633
        %v654 = vmul.f32 %v519, %v633
        %v655 = vmul.f32 %v521, %v634
        %v656 = vmul.f32 %v523, %v634
        %v657 = vmul.f32 %v525, %v635
        %v658 = vmul.f32 %v527, %v635
        %v659 = vmul.f32 %v529, %v636
        %v660 = vmul.f32 %v531, %v636
        %v661 = vmul.f32 %v533, %v637
        %v662 = vmul.f32 %v535, %v637
        %v663 = vmul.f32 %v537, %v638
        %v664 = vmul.f32 %v539, %v638
        %v665 = vmul.f32 %v541, %v639
        %v666 = vmul.f32 %v543, %v639
        %v667 = vmul.f32 %v545, %v640
        %v668 = vmul.f32 %v547, %v640
        %v669 = vmul.f32 %v549, %v641
        %v670 = vmul.f32 %v551, %v641
        %v671 = vmul.f32 %v553, %v642
        %v672 = vmul.f32 %v555, %v642
        %v673 = vmul.f32 %v557, %v643
        %v674 = vmul.f32 %v559, %v643
        %v675 = vmul.f32 %v561, %v644
        %v676 = vmul.f32 %v563, %v644
        %v677 = vpack.c.bf16 %v647, %v645
        %v678 = vpack.c.bf16 %v648, %v646
        %v679 = vpack.c.bf16 %v651, %v649
        %v680 = vpack.c.bf16 %v652, %v650
        %v681 = vpack.c.bf16 %v655, %v653
        %v682 = vpack.c.bf16 %v656, %v654
        %v683 = vpack.c.bf16 %v659, %v657
        %v684 = vpack.c.bf16 %v660, %v658
        %v685 = vpack.c.bf16 %v663, %v661
        %v686 = vpack.c.bf16 %v664, %v662
        %v687 = vpack.c.bf16 %v667, %v665
        %v688 = vpack.c.bf16 %v668, %v666
        %v689 = vpack.c.bf16 %v671, %v669
        %v690 = vpack.c.bf16 %v672, %v670
        %v691 = vpack.c.bf16 %v675, %v673
        %v692 = vpack.c.bf16 %v676, %v674
        %693 = vmatprep.subr.bf16.mxu0 %v678
        %694 = vmatpush1.bf16.msra.mxu0 %v677
        %695 = vmatprep.subr.bf16.mxu0 %v680
        %696 = vmatpush1.bf16.msra.mxu0 %v679
        %697 = vmatprep.subr.bf16.mxu0 %v682
        %698 = vmatpush1.bf16.msra.mxu0 %v681
        %699 = vmatprep.subr.bf16.mxu0 %v684
        %700 = vmatpush1.bf16.msra.mxu0 %v683
        %701 = vmatprep.subr.bf16.mxu0 %v686
        %702 = vmatpush1.bf16.msra.mxu0 %v685
        %703 = vmatprep.subr.bf16.mxu0 %v688
        %704 = vmatpush1.bf16.msra.mxu0 %v687
        %705 = vmatprep.subr.bf16.mxu0 %v690
        %706 = vmatpush1.bf16.msra.mxu0 %v689
        %707 = vmatprep.subr.bf16.mxu0 %v692
        %708 = vmatpush1.bf16.msra.mxu0 %v691
        %709 = vmatprep.subr.bf16.mxu0 0
        %710 = vmatpush1.bf16.msra.mxu0 0
        %711 = vmatprep.subr.bf16.mxu0 0
        %712 = vmatpush1.bf16.msra.mxu0 0
        %713 = vmatprep.subr.bf16.mxu0 0
        %714 = vmatpush1.bf16.msra.mxu0 0
        %715 = vmatprep.subr.bf16.mxu0 0
        %716 = vmatpush1.bf16.msra.mxu0 0
        %717 = vmatprep.subr.bf16.mxu0 0
        %718 = vmatpush1.bf16.msra.mxu0 0
        %719 = vmatprep.subr.bf16.mxu0 0
        %720 = vmatpush1.bf16.msra.mxu0 0
        %721 = vmatprep.subr.bf16.mxu0 0
        %722 = vmatpush1.bf16.msra.mxu0 0
        %723 = vmatprep.subr.bf16.mxu0 0
        %724 = vmatpush1.bf16.msra.mxu0 0
        %725 = vmatprep.mubr.bf16.mxu0 0
        %726 = vmatmul.mubr.bf16.gmra.mrb[0].mxu0 %v253
        %v727 = vpop.f32.mrb[0].mxu0
        %v728 = vadd.f32 0.0, %v727
        %v729 = vpop.f32.mrb[0].mxu0
        %v730 = vadd.f32 0.0, %v729
        %v731 = vpop.f32.mrb[0].mxu0
        %v732 = vpop.f32.mrb[0].mxu0
        %733 = vdwg.mxu0
        // Predicated region
        $region45: #{tpu_custom_call.1} parent=31 // pred_check
          %p734 = pneg %p216
        $region46: #{tpu_custom_call.1} parent=31 // pred_check_branch
          %736 = sbr.rel (%p734) target = $region48
        $region47: #{tpu_custom_call.1} parent=31 // pred_region
          %v737 = vld [vmem:[%s189] sm:$0xff]
          %v738 = vld [vmem:[%s189 + $0x8] sm:$0xff]
          %v739 = vmul.f32 %v737, 2.0
          %v740 = vmul.f32 %v738, 2.0
          %v741 = vadd.f32 %v728, %v739
          %v742 = vadd.f32 %v730, %v740
          %743 = vst [vmem:[%s212] sm:$0xff] %v741
          %744 = vst [vmem:[%s212 + $0x8] sm:$0xff] %v742
        $region48: #{tpu_custom_call.1} parent=31 // pred_fallthru
          _
        %p745 = scmp.gt.s32.totalorder %s26, 0
        // Predicated region
        $region49: #{tpu_custom_call.1} parent=31 // pred_check
          %p746 = pneg %p745
        $region50: #{tpu_custom_call.1} parent=31 // pred_check_branch
          %748 = sbr.rel (%p746) target = $region52
        $region51: #{tpu_custom_call.1} parent=31 // pred_region
          %v749 = vld [vmem:[%s212] sm:$0xff]
          %v750 = vld [vmem:[%s212 + $0x8] sm:$0xff]
          %v751 = vadd.f32 %v749, %v728
          %v752 = vadd.f32 %v750, %v730
          %753 = vst [vmem:[%s212] sm:$0xff] %v751
          %754 = vst [vmem:[%s212 + $0x8] sm:$0xff] %v752
        $region52: #{tpu_custom_call.1} parent=31 // pred_fallthru
          _
        %p755 = scmp.eq.s32.totalorder %s26, 1
        // Predicated region
        $region53: #{tpu_custom_call.1} parent=31 // pred_check
          %p756 = pneg %p755
        $region54: #{tpu_custom_call.1} parent=31 // pred_check_branch
          %758 = sbr.rel (%p756) target = $region56
        $region55: #{tpu_custom_call.1} parent=31 // pred_region
          %v759 = vld [vmem:[%s189] sm:$0xff]
          %v760 = vld [vmem:[%s189 + $0x8] sm:$0xff]
          %v761 = vpack.c.bf16 %v759, %v759
          %v762 = vpack.c.bf16 %v760, %v760
          %763 = vmatprep.subr.bf16.mxu0 %v762
          %764 = vmatpush1.bf16.xpose.msra.mxu0 %v761
          %765 = vmatprep.subr.bf16.mxu0 0
          %766 = vmatpush1.bf16.xpose.msra.mxu0 0
          %767 = vmatprep.subr.bf16.mxu0 0
          %768 = vmatpush1.bf16.xpose.msra.mxu0 0
          %769 = vmatprep.subr.bf16.mxu0 0
          %770 = vmatpush1.bf16.xpose.msra.mxu0 0
          %771 = vmatprep.subr.bf16.mxu0 0
          %772 = vmatpush1.bf16.xpose.msra.mxu0 0
          %773 = vmatprep.subr.bf16.mxu0 0
          %774 = vmatpush1.bf16.xpose.msra.mxu0 0
          %775 = vmatprep.subr.bf16.mxu0 0
          %776 = vmatpush1.bf16.xpose.msra.mxu0 0
          %777 = vmatprep.subr.bf16.mxu0 0
          %778 = vmatpush1.bf16.xpose.msra.mxu0 0
          %779 = vmatprep.subr.bf16.mxu0 0
          %780 = vmatpush1.bf16.xpose.msra.mxu0 0
          %781 = vmatprep.subr.bf16.mxu0 0
          %782 = vmatpush1.bf16.xpose.msra.mxu0 0
          %783 = vmatprep.subr.bf16.mxu0 0
          %784 = vmatpush1.bf16.xpose.msra.mxu0 0
          %785 = vmatprep.subr.bf16.mxu0 0
          %786 = vmatpush1.bf16.xpose.msra.mxu0 0
          %787 = vmatprep.subr.bf16.mxu0 0
          %788 = vmatpush1.bf16.xpose.msra.mxu0 0
          %789 = vmatprep.subr.bf16.mxu0 0
          %790 = vmatpush1.bf16.xpose.msra.mxu0 0
          %791 = vmatprep.subr.bf16.mxu0 0
          %792 = vmatpush1.bf16.xpose.msra.mxu0 0
          %793 = vmatprep.subr.bf16.mxu0 0
          %794 = vmatpush1.bf16.xpose.msra.mxu0 0
          %795 = vmatprep.mubr.bf16.mxu0 %v762
          %796 = vmatmul.mubr.bf16.gmra.mrb[0].mxu0 %v761
          %v797 = vpop.f32.mrb[0].mxu0
          %v798 = vadd.f32 0.0, %v797
          %v799 = vpop.f32.mrb[0].mxu0
          %v800 = vpop.f32.mrb[0].mxu0
          %v801 = vpop.f32.mrb[0].mxu0
          %802 = vdwg.mxu0
          %v803 = vsel %vm275, %v798, -inf
          %804 = vmax.xlane.f32.xlu0 %v803
          %v805 = vpop.xlane.xlu0 %804
          %v806 = vsub.f32 %v798, %v805
          %v807 = vmul.f32 %v806, 1.442695
          %v808 = vpow.pop %v807
          %v809 = vsel %vm275, %v808, 0.0
          %810 = vadd.xlane.f32.xlu0 %v809
          %v811 = vpop.xlane.xlu0 %810
          %v812 = vrcp.pop %v811
          %v813 = vpack.c.bf16 %v808, %v808
          %v815 = vsel %vm275, %v813, 0
          %v818 = vsel %vm300, %v761, 0
          %v821 = vsel %vm300, %v762, 0
          %823 = vmatprep.subr.bf16.mxu0 %v821
          %824 = vmatpush1.bf16.msra.mxu0 %v818
          %825 = vmatprep.subr.bf16.mxu0 0
          %826 = vmatpush1.bf16.msra.mxu0 0
          %827 = vmatprep.subr.bf16.mxu0 0
          %828 = vmatpush1.bf16.msra.mxu0 0
          %829 = vmatprep.subr.bf16.mxu0 0
          %830 = vmatpush1.bf16.msra.mxu0 0
          %831 = vmatprep.subr.bf16.mxu0 0
          %832 = vmatpush1.bf16.msra.mxu0 0
          %833 = vmatprep.subr.bf16.mxu0 0
          %834 = vmatpush1.bf16.msra.mxu0 0
          %835 = vmatprep.subr.bf16.mxu0 0
          %836 = vmatpush1.bf16.msra.mxu0 0
          %837 = vmatprep.subr.bf16.mxu0 0
          %838 = vmatpush1.bf16.msra.mxu0 0
          %839 = vmatprep.subr.bf16.mxu0 0
          %840 = vmatpush1.bf16.msra.mxu0 0
          %841 = vmatprep.subr.bf16.mxu0 0
          %842 = vmatpush1.bf16.msra.mxu0 0
          %843 = vmatprep.subr.bf16.mxu0 0
          %844 = vmatpush1.bf16.msra.mxu0 0
          %845 = vmatprep.subr.bf16.mxu0 0
          %846 = vmatpush1.bf16.msra.mxu0 0
          %847 = vmatprep.subr.bf16.mxu0 0
          %848 = vmatpush1.bf16.msra.mxu0 0
          %849 = vmatprep.subr.bf16.mxu0 0
          %850 = vmatpush1.bf16.msra.mxu0 0
          %851 = vmatprep.subr.bf16.mxu0 0
          %852 = vmatpush1.bf16.msra.mxu0 0
          %853 = vmatprep.subr.bf16.mxu0 0
          %854 = vmatpush1.bf16.msra.mxu0 0
          %855 = vmatprep.mubr.bf16.mxu0 0
          %856 = vmatmul.mubr.bf16.gmra.mrb[0].mxu0 %v815
          %v857 = vpop.f32.mrb[0].mxu0
          %v858 = vadd.f32 0.0, %v857
          %v859 = vpop.f32.mrb[0].mxu0
          %v860 = vadd.f32 0.0, %v859
          %v861 = vpop.f32.mrb[0].mxu0
          %v862 = vpop.f32.mrb[0].mxu0
          %863 = vdwg.mxu0
          %v864 = vstv %s215
          %v865 = vmul.f32 %v812, %v864
          %v866 = vmul.f32 %v858, %v865
          %v867 = vmul.f32 %v860, %v865
          %v868 = vld [vmem:[%s212] sm:$0xff]
          %v869 = vld [vmem:[%s212 + $0x8] sm:$0xff]
          %v870 = vadd.f32 %v868, %v866
          %v871 = vadd.f32 %v869, %v867
          %872 = vst [vmem:[%s212] sm:$0xff] %v870
          %873 = vst [vmem:[%s212 + $0x8] sm:$0xff] %v871
        $region56: #{tpu_custom_call.1} parent=31 // pred_fallthru
          _
        %s874 = sand.u32 %s109, 1
        %s875 = scalar_lea.sflag [#allocation5], %s874
        %s876 = sand.u32 %s109, 1
        %s877 = smul.addr %s876, 16
        %s878 = scalar_lea.vmem [#allocation8], %s877
        // Predicated region
        $region57: #{tpu_custom_call.1} parent=31 // pred_check
          %p879 = pneg %p119
        $region58: #{tpu_custom_call.1} parent=31 // pred_check_branch
          %881 = sbr.rel (%p879) target = $region60
        $region59: #{tpu_custom_call.1} parent=31 // pred_region
          %s883 = ssub.s32 256, 256
          %884 = vsyncadd %s875, %s883
          %s885 = smul.addr %s25, 2
          %s886 = smul.addr %s885, 128
          %s887 = scalar_lea.hbm %s3, %s886
          %s889 = sshll.u32 %s878, 4
          %s890 = int_to_ptr.vmem [resolvable:$true] %s889
          %892 = dma.vmem_to_hbm [thread:$0]  %s890, 256, %s887, %s875
        $region60: #{tpu_custom_call.1} parent=31 // pred_fallthru
          _
      $region32: #{tpu_custom_call.1} parent=5 // pred_fallthru
        _
      %p893 = scmp.le.s32.totalorder 2, %s16
      // Predicated region
      $region61: #{tpu_custom_call.1} parent=5 // pred_check
        %p894 = pneg %p893
      $region62: #{tpu_custom_call.1} parent=5 // pred_check_branch
        %896 = sbr.rel (%p894) target = $region64
      $region63: #{tpu_custom_call.1} parent=5 // pred_region
        %s897 = ssub.s32 %s16, 2
        // Predicated region
        $region65: #{tpu_custom_call.1} parent=63 // pred_check
          %p898 = pneg %p125
        $region66: #{tpu_custom_call.1} parent=63 // pred_check_branch
          %900 = sbr.rel (%p898) target = $region68
        $region67: #{tpu_custom_call.1} parent=63 // pred_region
          %s901 = sand.u32 %s110, 1
          %s902 = scalar_lea.sflag [#allocation5], %s901
          %s903 = sand.u32 %s110, 1
          %s904 = smul.addr %s903, 16
          %s905 = scalar_lea.vmem [#allocation8], %s904
          %906 = dma.done %s902, 256
        $region68: #{tpu_custom_call.1} parent=63 // pred_fallthru
          _
      $region64: #{tpu_custom_call.1} parent=5 // pred_fallthru
        _
    $region6: #{tpu_custom_call.1} parent=1 // loop_footer
      %s20 = sadd.s32 1, %s16
    $region7: #{tpu_custom_call.1} parent=1 // loop_footer_branch
      %15 = sbr.rel target = $region3
    $region8: #{tpu_custom_call.1} parent=1 // loop_exit
      _
    %907 = vsyncpa [#allocation4], 1
    %s908 = scalar_lea.sflag [#allocation4], 1
    %909 = vsyncpa %s908, 1
    %910 = vsyncpa [#allocation5], 1
    %s911 = scalar_lea.sflag [#allocation5], 1
    %912 = vsyncpa %s911, 1
    %913 = vsyncpa [#allocation6], 1
    %s914 = scalar_lea.sflag [#allocation6], 1
    %915 = vsyncpa %s914, 1

</llo_original>
